<compile_context>
chip_gen: v5e
topology: v5e:2x2
jax: 0.10.0
libtpu: 0.0.40
codegen_flags: <defaults>
</compile_context>

<pallas_src>
import functools

import jax
import jax.numpy as jnp
from jax.experimental import pallas as pl
from jax.experimental.pallas import tpu as pltpu


def _round_up(v, m):
    return ((v + m - 1) // m) * m


def _vmem_capacity_bytes():
    """Physical per-core VMEM capacity (bytes); conservative fallback."""
    try:
        return int(pltpu.get_tpu_info().vmem_capacity_bytes)
    except Exception:  # hardware-info query only -- never masks kernel errors
        return 64 * 2 ** 20  # v7x per-TensorCore size == worst case


def _layer_norm_f32(k, g, b, hidden, eps):
    """One-pass LayerNorm over the first `hidden` columns of f32 `k`.

    Padded columns of k are exactly zero (zero weight columns -> relu^2 == 0),
    so plain sums divided by `hidden` give exact statistics; gamma/beta are
    zero-padded so padded output columns stay zero.  Avoids the centered
    (rows, Hp) temporary of a two-pass LN (one fewer VPU pass + f32 tile).
    """
    inv_h = jnp.float32(1.0 / hidden)
    mu = jnp.sum(k, axis=-1, keepdims=True) * inv_h
    ex2 = jnp.sum(jnp.square(k), axis=-1, keepdims=True) * inv_h
    var = jnp.maximum(ex2 - jnp.square(mu), 0.0)
    return (k - mu) * jax.lax.rsqrt(var + eps) * g + b


# ---------------------------------------------------------------------------
# Kernels
# ---------------------------------------------------------------------------
def _channelmix_fused_kernel(x_ref, wkr_ref, wv_ref, *rest, use_key_norm, eps,
                             hidden, hidden_p):
    """Single-axis path: fused [Wk|Wr]^T -> one MXU matmul per row tile."""
    if use_key_norm:
        g_ref, b_ref, o_ref = rest
    else:
        (o_ref,) = rest

    x = x_ref[...]                                        # (tm, Cp) native dtype
    # Fused key + receptance projection, f32 accumulation on the MXU.
    kr = jnp.dot(x, wkr_ref[...], preferred_element_type=jnp.float32)
    # relu^2 directly on the lane-aligned key slice (no extra named temps).
    k = jnp.square(jnp.maximum(kr[:, :hidden_p], 0.0))
    if use_key_norm:
        k = _layer_norm_f32(k, g_ref[...].astype(jnp.float32),
                            b_ref[...].astype(jnp.float32), hidden, eps)
    # Value projection in the weight's native dtype (bf16 MXU fast path).
    kv = jnp.dot(k.astype(wv_ref.dtype), wv_ref[...],
                 preferred_element_type=jnp.float32)
    r = jax.nn.sigmoid(kr[:, hidden_p:])                  # EUP slot
    o_ref[...] = (r * kv).astype(o_ref.dtype)


def _channelmix_tiled_kernel(x_ref, wk_ref, wr_ref, wv_ref, *rest,
                             use_key_norm, eps, hidden):
    """Column-tiled path: grid = (row tiles, output-column tiles).

    k is computed once per row tile (j == 0) into a VMEM scratch and reused
    for every output-column tile; only Wk^T stays fully resident while
    Wr^T / Wv^T stream through VMEM in column tiles (required for v7x's
    64 MiB VMEM at large n_embd).
    """
    if use_key_norm:
        g_ref, b_ref, o_ref, k_ref = rest
    else:
        o_ref, k_ref = rest

    @pl.when(pl.program_id(1) == 0)
    def _compute_k():
        k = jnp.dot(x_ref[...], wk_ref[...], preferred_element_type=jnp.float32)
        k = jnp.square(jnp.maximum(k, 0.0))
        if use_key_norm:
            k = _layer_norm_f32(k, g_ref[...].astype(jnp.float32),
                                b_ref[...].astype(jnp.float32), hidden, eps)
        k_ref[...] = k.astype(k_ref.dtype)

    r_logit = jnp.dot(x_ref[...], wr_ref[...], preferred_element_type=jnp.float32)
    kv = jnp.dot(k_ref[...], wv_ref[...], preferred_element_type=jnp.float32)
    o_ref[...] = (jax.nn.sigmoid(r_logit) * kv).astype(o_ref.dtype)


# ---------------------------------------------------------------------------
# Parameter preparation (call once, outside the per-forward path)
# ---------------------------------------------------------------------------
def prepare_channelmix_params(wk_t, wr_t, wv_t, gamma=None, beta=None):
    """Pad channel dims to lane multiples (128) and pre-fuse [Wk | Wr]^T.

    Call ONCE at parameter-setup time: the concatenation is a full HBM copy
    of the weights and must not be re-executed on every forward call.
      wk_t: (C, H)   key weight, pre-transposed (H = hidden_rate * C)
      wr_t: (C, C)   receptance weight, pre-transposed
      wv_t: (H, C)   value weight, pre-transposed
      gamma, beta: (H,) LayerNorm affine, or None
    """
    C, H = wk_t.shape
    Cp, Hp = _round_up(C, 128), _round_up(H, 128)
    wk_p = jnp.pad(wk_t, ((0, Cp - C), (0, Hp - H)))
    wr_p = jnp.pad(wr_t, ((0, Cp - C), (0, Cp - C)))
    wv_p = jnp.pad(wv_t, ((0, Hp - H), (0, Cp - C)))
    w_kr = jnp.concatenate([wk_p, wr_p], axis=1)            # (Cp, Hp + Cp)
    if gamma is not None:
        g2 = jnp.pad(gamma, (0, Hp - H)).reshape(1, Hp)
        b2 = jnp.pad(beta, (0, Hp - H)).reshape(1, Hp)
    else:
        g2 = b2 = None
    return dict(C=C, H=H, Cp=Cp, Hp=Hp, wk=wk_p, wr=wr_p, wv=wv_p,
                w_kr=w_kr, gamma=g2, beta=b2)


def _single_buffered_weight_call(call_fn):
    # Constant weight blocks never change across the grid -> single-buffer
    # them.  Only feature/lowering-style failures fall back to the default
    # double-buffered weights; genuine spec/kernel bugs re-raise from the
    # fallback too (its specs are identical apart from pipeline_mode).
    try:
        return call_fn(pl.Buffered(1), 1)
    except (pltpu.LoweringException, NotImplementedError, ValueError, TypeError):
        return call_fn(None, 2)


# ---------------------------------------------------------------------------
# Forward wrapper
# ---------------------------------------------------------------------------
def vrwkv_channelmix(x, params, *, use_key_norm=False, eps=1e-5, tm=None,
                     column_tile=None, force_column_tiles=False):
    """VRWKV ChannelMix forward.

    x      : (B, T, C) tokens (T = h*w; the `resolution` arg of the module is
             unused by the math).
    params : dict from prepare_channelmix_params.
    """
    B, T, C = x.shape
    if C != params["C"]:
        raise ValueError(f"x channels {C} != prepared params C {params['C']}")
    if use_key_norm and params["gamma"] is None:
        raise ValueError("key_norm=True requires gamma/beta in params")
    H, Cp, Hp = params["H"], params["Cp"], params["Hp"]
    N = B * T

    xf = x.reshape(N, C)
    if Cp != C:
        xf = jnp.pad(xf, ((0, 0), (0, Cp - C)))

    x_it = jnp.dtype(x.dtype).itemsize
    w_dt = jnp.dtype(params["wv"].dtype)
    w_it = w_dt.itemsize

    cap = _vmem_capacity_bytes()
    budget = cap - (8 << 20)                  # compiler-scratch headroom

    # ---- row tile -----------------------------------------------------------
    if tm is None:
        # Bigger row tiles amortize the ~0.35us per-grid-step overhead; stay
        # smaller when C is large or VMEM is 64 MiB-class (v7x).
        tm = 512 if (Cp <= 1024 and cap >= (96 << 20)) else 256
    pack = max(8, 32 // x_it)                 # sublane packing: f32->8, bf16->16
    tm_eff = max(pack, min(_round_up(tm, pack), _round_up(N, pack)))
    # v7x has 2 TensorCores: give the "parallel" row axis at least 2 steps.
    if N > pack and pl.cdiv(N, tm_eff) < 2:
        tm_eff = max(pack, _round_up(pl.cdiv(N, 2), pack))
    n_rows = pl.cdiv(N, tm_eff)

    # ---- VMEM accounting / path selection ------------------------------------
    fused_w = (Cp * (Hp + Cp) + Hp * Cp) * w_it            # weights, 1 buffer
    act = 2 * 2 * tm_eff * Cp * x_it                       # x + out, double buf
    f32_tmp = 4 * tm_eff * (2 * Hp + 3 * Cp)               # kr / k / kv / r
    fused_need = fused_w + act + f32_tmp + (2 << 20)
    use_tiled = force_column_tiles or (fused_need > budget)

    flops = int(2 * N * Cp * (2 * Hp + Cp))
    cost = pl.CostEstimate(flops=flops, transcendentals=int(N * Cp),
                           bytes_accessed=int(2 * N * Cp * x_it + fused_w))
    out_shape = jax.ShapeDtypeStruct((N, Cp), x.dtype)

    if not use_tiled:
        kernel = functools.partial(_channelmix_fused_kernel,
                                   use_key_norm=use_key_norm, eps=eps,
                                   hidden=H, hidden_p=Hp)
        inputs = [xf, params["w_kr"], params["wv"]]
        if use_key_norm:
            inputs += [params["gamma"], params["beta"]]

        def _call(const_mode, w_buffers):
            vmem_limit = int(min(budget, max(
                fused_need + (w_buffers - 1) * fused_w + (4 << 20), 32 << 20)))
            in_specs = [
                pl.BlockSpec((tm_eff, Cp), lambda i: (i, 0)),             # x tile
                pl.BlockSpec((Cp, Hp + Cp), lambda i: (0, 0),
                             pipeline_mode=const_mode),                   # [Wk|Wr]^T
                pl.BlockSpec((Hp, Cp), lambda i: (0, 0),
                             pipeline_mode=const_mode),                   # Wv^T
            ]
            if use_key_norm:
                in_specs += [pl.BlockSpec((1, Hp), lambda i: (0, 0),
                                          pipeline_mode=const_mode)] * 2  # gamma, beta
            return pl.pallas_call(
                kernel,
                out_shape=out_shape,
                grid=(n_rows,),
                in_specs=in_specs,
                out_specs=pl.BlockSpec((tm_eff, Cp), lambda i: (i, 0)),
                compiler_params=pltpu.CompilerParams(
                    dimension_semantics=("parallel",),
                    vmem_limit_bytes=vmem_limit),
                cost_estimate=cost,
            )(*inputs)

        out = _single_buffered_weight_call(_call)
    else:
        # Column-tiled path: only Wk^T (+ the k scratch) stays resident while
        # Wr^T / Wv^T stream through VMEM in output-column tiles.
        def tiled_need(tc, w_buffers=1):
            return (w_buffers * Cp * Hp * w_it            # resident Wk^T
                    + tm_eff * Hp * w_it                  # k scratch
                    + 2 * (Cp + Hp) * tc * w_it           # Wr/Wv tiles, double buf
                    + 2 * tm_eff * Cp * x_it              # x tile, double buf
                    + 2 * tm_eff * tc * x_it              # out tile, double buf
                    + 4 * tm_eff * (Hp + 2 * tc)          # f32 temporaries
                    + (2 << 20))

        if column_tile is not None:
            tn = min(Cp, max(128, _round_up(column_tile, 128)))
        else:
            tn = 128
            for cand in (1024, 512, 256):                 # largest tile that fits
                if cand <= Cp and tiled_need(cand) <= budget:
                    tn = cand
                    break
        n_cols = pl.cdiv(Cp, tn)

        kernel = functools.partial(_channelmix_tiled_kernel,
                                   use_key_norm=use_key_norm, eps=eps, hidden=H)
        inputs = [xf, params["wk"], params["wr"], params["wv"]]
        if use_key_norm:
            inputs += [params["gamma"], params["beta"]]

        def _call(const_mode, w_buffers):
            vmem_limit = int(min(budget, max(
                tiled_need(tn, w_buffers) + (4 << 20), 32 << 20)))
            in_specs = [
                pl.BlockSpec((tm_eff, Cp), lambda i, j: (i, 0)),          # x (reused over j)
                pl.BlockSpec((Cp, Hp), lambda i, j: (0, 0),
                             pipeline_mode=const_mode),                   # Wk^T, resident
                pl.BlockSpec((Cp, tn), lambda i, j: (0, j)),              # Wr^T column tile
                pl.BlockSpec((Hp, tn), lambda i, j: (0, j)),              # Wv^T column tile
            ]
            if use_key_norm:
                in_specs += [pl.BlockSpec((1, Hp), lambda i, j: (0, 0),
                                          pipeline_mode=const_mode)] * 2  # gamma, beta
            return pl.pallas_call(
                kernel,
                out_shape=out_shape,
                grid=(n_rows, n_cols),
                in_specs=in_specs,
                out_specs=pl.BlockSpec((tm_eff, tn), lambda i, j: (i, j)),
                scratch_shapes=[pltpu.VMEM((tm_eff, Hp), w_dt)],          # k scratch
                compiler_params=pltpu.CompilerParams(
                    dimension_semantics=("parallel", "arbitrary"),
                    vmem_limit_bytes=vmem_limit),
                cost_estimate=cost,
            )(*inputs)

        out = _single_buffered_weight_call(_call)

    if Cp != C:
        out = out[:, :C]
    return out.reshape(B, T, C)


# ---------------------------------------------------------------------------
# Reference + test
# ---------------------------------------------------------------------------
def _reference(x, wk_t, wr_t, wv_t, gamma, beta, use_key_norm, eps=1e-5):
    hi = jax.lax.Precision.HIGHEST
    xf = x.astype(jnp.float32)
    k = jnp.einsum('btc,ch->bth', xf, wk_t.astype(jnp.float32), precision=hi)
    k = jnp.square(jnp.maximum(k, 0.0))
    if use_key_norm:
        mu = jnp.mean(k, axis=-1, keepdims=True)
        var = jnp.mean(jnp.square(k - mu), axis=-1, keepdims=True)
        k = ((k - mu) * jax.lax.rsqrt(var + eps)
             * gamma.astype(jnp.float32) + beta.astype(jnp.float32))
    kv = jnp.einsum('bth,hc->btc', k, wv_t.astype(jnp.float32), precision=hi)
    r = jax.nn.sigmoid(jnp.einsum('btc,cd->btd', xf, wr_t.astype(jnp.float32),
                                  precision=hi))
    return r * kv


def _make_inputs(key, B, T, n_embd, hidden_rate, dt):
    hidden = hidden_rate * n_embd
    kx, kk, kr, kv, kg, kb = jax.random.split(key, 6)
    x = jax.random.normal(kx, (B, T, n_embd), jnp.float32).astype(dt)
    # nn.Linear stores weight as (out, in); the kernel wants (in, out).
    wk_t = (jax.random.normal(kk, (hidden, n_embd), jnp.float32) * 0.1).T.astype(dt)
    wr_t = (jax.random.normal(kr, (n_embd, n_embd), jnp.float32) * 0.1).T.astype(dt)
    wv_t = (jax.random.normal(kv, (n_embd, hidden), jnp.float32) * 0.1).T.astype(dt)
    gamma = (1.0 + 0.1 * jax.random.normal(kg, (hidden,), jnp.float32)).astype(dt)
    beta = (0.05 * jax.random.normal(kb, (hidden,), jnp.float32)).astype(dt)
    return x, wk_t, wr_t, wv_t, gamma, beta


if __name__ == "__main__":
    # Module-consistent small shapes: B=2, resolution (h, w) = (9, 8) -> T=72.
    B, h, w = 2, 9, 8
    T = h * w
    dt = jnp.bfloat16                       # native MXU fast-path dtype
    key = jax.random.PRNGKey(0)
    k_small, k_big = jax.random.split(key)

    # Cases 1/2: n_embd=32, hidden_rate=4 -> hidden=128; fused single-matmul
    # path; key_norm off/on; tm=64 exercises a partial trailing row block.
    x, wk_t, wr_t, wv_t, gamma, beta = _make_inputs(k_small, B, T, 32, 4, dt)
    params = prepare_channelmix_params(wk_t, wr_t, wv_t, gamma, beta)
    cases = [
        (x, wk_t, wr_t, wv_t, gamma, beta, params, dict(use_key_norm=False)),
        (x, wk_t, wr_t, wv_t, gamma, beta, params, dict(use_key_norm=True, tm=64)),
    ]

    # Case 3: exercise the column-tiled (v7x large-C) path at small scale by
    # forcing 128-wide output-column tiles (n_embd=256 -> 2 column tiles).
    xb, wkb, wrb, wvb, gb, bb = _make_inputs(k_big, B, T, 256, 4, dt)
    params_b = prepare_channelmix_params(wkb, wrb, wvb, gb, bb)
    cases.append((xb, wkb, wrb, wvb, gb, bb, params_b,
                  dict(use_key_norm=True, force_column_tiles=True,
                       column_tile=128)))

    for xi, wki, wri, wvi, gi, bi, pi, kw in cases:
        out = vrwkv_channelmix(xi, pi, **kw)
        out = jax.block_until_ready(out)
        ref = _reference(xi, wki, wri, wvi, gi, bi, kw["use_key_norm"])
        assert out.shape == xi.shape, (out.shape, xi.shape)
        err = float(jnp.max(jnp.abs(out.astype(jnp.float32) - ref)))
        # bf16 operands vs f32 reference -> loose tolerance.
        assert jnp.allclose(out.astype(jnp.float32), ref,
                            atol=5e-2, rtol=5e-2), (kw, err)

    print("KERNEL_OK")
</pallas_src>

<mosaic_0001>
module attributes {stable_mosaic.version = 11 : i64} {
  func.func @_channelmix_fused_kernel(%arg0: i32, %arg1: memref<80x128xbf16, #tpu.memory_space<vmem>>, %arg2: memref<128x256xbf16, #tpu.memory_space<vmem>>, %arg3: memref<128x128xbf16, #tpu.memory_space<vmem>>, %arg4: memref<80x128xbf16, #tpu.memory_space<vmem>>) attributes {dimension_semantics = [#tpu.dimension_semantics<parallel>], iteration_bounds = array<i64: 2>, scalar_prefetch = 0 : i64, scratch_operands = 0 : i64, tpu.core_type = #tpu.core_type<tc>, window_params = [{transform_indices = @transform_0, window_bounds = array<i64: 80, 128>}, {pipeline_mode = #tpu.pipeline_mode<synchronous>, transform_indices = @transform_1, window_bounds = array<i64: 128, 256>}, {pipeline_mode = #tpu.pipeline_mode<synchronous>, transform_indices = @transform_2, window_bounds = array<i64: 128, 128>}, {transform_indices = @transform_3, window_bounds = array<i64: 80, 128>}]} {
    %c0 = arith.constant 0 : index
    %c0_0 = arith.constant 0 : index
    %0 = vector.load %arg1[%c0, %c0_0] : memref<80x128xbf16, #tpu.memory_space<vmem>>, vector<80x128xbf16>
    %c0_1 = arith.constant 0 : index
    %c0_2 = arith.constant 0 : index
    %1 = vector.load %arg2[%c0_1, %c0_2] : memref<128x256xbf16, #tpu.memory_space<vmem>>, vector<128x256xbf16>
    %cst = arith.constant dense<0.000000e+00> : vector<80x256xf32>
    %2 = tpu.matmul %0, %1, %cst {dimension_numbers = #tpu.dot_dimension_numbers<[1], [0], [0], [1], [0, 0, 1, 1], [], []>} : vector<80x128xbf16>, vector<128x256xbf16>, vector<80x256xf32> -> vector<80x256xf32>
    %3 = vector.extract_strided_slice %2 {offsets = [0, 0], sizes = [80, 128], strides = [1, 1]} : vector<80x256xf32> to vector<80x128xf32>
    %cst_3 = arith.constant 0.000000e+00 : f32
    %4 = vector.broadcast %cst_3 : f32 to vector<80x128xf32>
    %5 = arith.maximumf %3, %4 : vector<80x128xf32>
    %6 = arith.mulf %5, %5 : vector<80x128xf32>
    %7 = arith.truncf %6 : vector<80x128xf32> to vector<80x128xbf16>
    %c0_4 = arith.constant 0 : index
    %c0_5 = arith.constant 0 : index
    %8 = vector.load %arg3[%c0_4, %c0_5] : memref<128x128xbf16, #tpu.memory_space<vmem>>, vector<128x128xbf16>
    %cst_6 = arith.constant dense<0.000000e+00> : vector<80x128xf32>
    %9 = tpu.matmul %7, %8, %cst_6 {dimension_numbers = #tpu.dot_dimension_numbers<[1], [0], [0], [1], [0, 0, 1, 1], [], []>} : vector<80x128xbf16>, vector<128x128xbf16>, vector<80x128xf32> -> vector<80x128xf32>
    %10 = vector.extract_strided_slice %2 {offsets = [0, 128], sizes = [80, 128], strides = [1, 1]} : vector<80x256xf32> to vector<80x128xf32>
    %11 = arith.negf %10 : vector<80x128xf32>
    %12 = math.exp %11 : vector<80x128xf32>
    %cst_7 = arith.constant 1.000000e+00 : f32
    %13 = vector.broadcast %cst_7 : f32 to vector<80x128xf32>
    %14 = arith.addf %13, %12 : vector<80x128xf32>
    %15 = arith.divf %13, %14 : vector<80x128xf32>
    %16 = arith.mulf %15, %9 : vector<80x128xf32>
    %17 = arith.truncf %16 : vector<80x128xf32> to vector<80x128xbf16>
    %c0_8 = arith.constant 0 : index
    %c0_9 = arith.constant 0 : index
    %18 = vector.load %arg4[%c0_8, %c0_9] : memref<80x128xbf16, #tpu.memory_space<vmem>>, vector<80x128xbf16>
    tpu.vector_store %arg4[%c0_8, %c0_9], %17 {strides = array<i32>} : memref<80x128xbf16, #tpu.memory_space<vmem>>, vector<80x128xbf16>,
    return
  }
  func.func @transform_0(%arg0: i32) -> (i32, i32) {
    %c0_i32 = arith.constant 0 : i32
    %c0_i32_0 = arith.constant 0 : i32
    return %arg0, %c0_i32 : i32, i32
  }
  func.func @transform_1(%arg0: i32) -> (i32, i32) {
    %c0_i32 = arith.constant 0 : i32
    %c0_i32_0 = arith.constant 0 : i32
    %c0_i32_1 = arith.constant 0 : i32
    return %c0_i32, %c0_i32_0 : i32, i32
  }
  func.func @transform_2(%arg0: i32) -> (i32, i32) {
    %c0_i32 = arith.constant 0 : i32
    %c0_i32_0 = arith.constant 0 : i32
    %c0_i32_1 = arith.constant 0 : i32
    return %c0_i32, %c0_i32_0 : i32, i32
  }
  func.func @transform_3(%arg0: i32) -> (i32, i32) {
    %c0_i32 = arith.constant 0 : i32
    %c0_i32_0 = arith.constant 0 : i32
    return %arg0, %c0_i32 : i32, i32
  }
}

</mosaic_0001>

<llo_original>
// kernel: tpu_custom_call.1
$region0: #{tpu_custom_call.1}
  #allocation0 [shape = 'u32[]', space=smem, size = 0x4, offset = 0x4, fixed_abs, tag = 'smem constant byte address 0x4 - core index']
  #allocation1 [shape = 'u32[72,128]{1,0:T(1,128)}', space=vmem, size = 0x9000, scoped, tag = 'internal scratch']
  %s0 = inlined_call_operand.hbm [shape: bf16[144,128], index: 0, kind: input, shape index: {}]
  %s1 = inlined_call_operand.hbm [shape: bf16[128,256], index: 1, kind: input, shape index: {}]
  %s2 = inlined_call_operand.hbm [shape: bf16[128,128], index: 2, kind: input, shape index: {}]
  %s3 = inlined_call_operand.hbm [shape: bf16[144,128], index: 3, kind: output, shape index: {}]
  %s4 = sld [smem:[#allocation0]]
  $region57: #{tpu_custom_call.1} parent=0
    _
  %s6 = ssub.s32 1, %s4
  %s7 = scalar_select 0, %s6, %s4
  $region1: #{tpu_custom_call.1} parent=0
    #allocation2 [shape = 'u8[40960]{0}', space=vmem, size = 0xa000, scoped, tag = 'input window, operand 0']
    #allocation3 [shape = 's32[2]{0}', space=sflag, size = 0x8, scoped, tag = 'scoped memory for tpu_custom_call.1']
    #allocation4 [shape = 's32[2]{0}', space=sflag, size = 0x8, scoped, tag = 'scoped memory for tpu_custom_call.1']
    #allocation5 [shape = 'u8[65536]{0}', space=vmem, size = 0x10000, scoped, tag = 'input window, operand 1, single buffered']
    #allocation6 [shape = 's32[1]{0}', space=sflag, size = 0x4, scoped, tag = 'scoped memory for tpu_custom_call.1']
    #allocation7 [shape = 'u8[32768]{0}', space=vmem, size = 0x8000, scoped, tag = 'input window, operand 2, single buffered']
    #allocation8 [shape = 'u8[40960]{0}', space=vmem, size = 0xa000, scoped, tag = 'output window, operand 0']
    %8 = vsyncpa [#allocation3], 0
    %s9 = scalar_lea.sflag [#allocation3], 1
    %10 = vsyncpa %s9, 0
    %11 = vsyncpa [#allocation6], 0
    %12 = vsyncpa [#allocation4], 0
    %s13 = scalar_lea.sflag [#allocation4], 1
    %14 = vsyncpa %s13, 0
    loop: start=0, step=1, limit=4
    $region2: #{tpu_custom_call.1} parent=1 // loop_pre_header
      _
    $region3: #{tpu_custom_call.1} parent=1 // loop_header
      %s16 = sphi 0, %s20
      %p17 = scmp.ge.s32.totalorder %s16, 4
      %s26 = sphi 0, %s28
      %s29 = sphi 0, %s26
      %s30 = sphi 0, %s29
      %s46 = sphi 0, %s30
      %s50 = sphi 0, %s50
      %s52 = sphi 0, %s50
      %s53 = sphi 0, %s52
      %s67 = sphi 0, %s53
      %s71 = sphi 0, %s71
      %s73 = sphi 0, %s71
      %s74 = sphi 0, %s73
      %s88 = sphi 0, %s74
      %s94 = sphi 0, %s96
      %s97 = sphi 0, %s94
      %s98 = sphi 0, %s97
      %s114 = sphi 0, %s98
    $region4: #{tpu_custom_call.1} parent=1 // loop_header_branch
      %19 = sbr.rel (%p17) target = $region8
    $region5: #{tpu_custom_call.1} parent=1 // loop_body
      %s21 = ssub.s32 %s16, 1
      %s22 = ssub.s32 %s16, 2
      %s23 = sadd.s32 %s16, 1
      %s24 = ssub.s32 %s16, %s23
      %p25 = scmp.eq.s32.totalorder %s24, 0
      %s27 = sadd.s32 %s26, 1
      %s28 = scalar_select %p25, %s26, %s27
      %p31 = pneg %p25
      %p32 = scmp.eq.s32.totalorder %s16, 1
      %p33 = por %p31, %p32
      %p34 = scmp.ne.s32.totalorder %s26, %s29
      %p35 = scmp.eq.s32.totalorder %s16, 0
      %p36 = por %p34, %p35
      %p37 = scmp.ne.s32.totalorder %s26, %s29
      %p38 = scmp.eq.s32.totalorder %s21, 1
      %p39 = por %p37, %p38
      %p40 = scmp.ne.s32.totalorder %s29, %s30
      %p41 = scmp.eq.s32.totalorder %s21, 0
      %p42 = por %p40, %p41
      %p43 = scmp.ne.s32.totalorder %s29, %s30
      %p44 = scmp.eq.s32.totalorder %s22, 1
      %p45 = por %p43, %p44
      %p47 = scmp.ne.s32.totalorder %s30, %s46
      %p48 = scmp.eq.s32.totalorder %s22, 0
      %p49 = por %p47, %p48
      %s51 = sadd.s32 %s50, 1
      %p54 = scmp.eq.s32.totalorder %s16, 1
      %p55 = scmp.ne.s32.totalorder %s50, %s52
      %p56 = scmp.eq.s32.totalorder %s16, 0
      %p57 = por %p55, %p56
      %p58 = scmp.ne.s32.totalorder %s50, %s52
      %p59 = scmp.eq.s32.totalorder %s21, 1
      %p60 = por %p58, %p59
      %p61 = scmp.ne.s32.totalorder %s52, %s53
      %p62 = scmp.eq.s32.totalorder %s21, 0
      %p63 = por %p61, %p62
      %p64 = scmp.ne.s32.totalorder %s52, %s53
      %p65 = scmp.eq.s32.totalorder %s22, 1
      %p66 = por %p64, %p65
      %p68 = scmp.ne.s32.totalorder %s53, %s67
      %p69 = scmp.eq.s32.totalorder %s22, 0
      %p70 = por %p68, %p69
      %s72 = sadd.s32 %s71, 1
      %p75 = scmp.eq.s32.totalorder %s16, 1
      %p76 = scmp.ne.s32.totalorder %s71, %s73
      %p77 = scmp.eq.s32.totalorder %s16, 0
      %p78 = por %p76, %p77
      %p79 = scmp.ne.s32.totalorder %s71, %s73
      %p80 = scmp.eq.s32.totalorder %s21, 1
      %p81 = por %p79, %p80
      %p82 = scmp.ne.s32.totalorder %s73, %s74
      %p83 = scmp.eq.s32.totalorder %s21, 0
      %p84 = por %p82, %p83
      %p85 = scmp.ne.s32.totalorder %s73, %s74
      %p86 = scmp.eq.s32.totalorder %s22, 1
      %p87 = por %p85, %p86
      %p89 = scmp.ne.s32.totalorder %s74, %s88
      %p90 = scmp.eq.s32.totalorder %s22, 0
      %p91 = por %p89, %p90
      %s92 = ssub.s32 %s16, %s23
      %p93 = scmp.eq.s32.totalorder %s92, 0
      %s95 = sadd.s32 %s94, 1
      %s96 = scalar_select %p93, %s94, %s95
      %p99 = pneg %p93
      %p100 = scmp.eq.s32.totalorder %s16, 1
      %p101 = por %p99, %p100
      %p102 = scmp.ne.s32.totalorder %s94, %s97
      %p103 = scmp.eq.s32.totalorder %s16, 0
      %p104 = por %p102, %p103
      %p105 = scmp.ne.s32.totalorder %s94, %s97
      %p106 = scmp.eq.s32.totalorder %s21, 1
      %p107 = por %p105, %p106
      %p108 = scmp.ne.s32.totalorder %s97, %s98
      %p109 = scmp.eq.s32.totalorder %s21, 0
      %p110 = por %p108, %p109
      %p111 = scmp.ne.s32.totalorder %s97, %s98
      %p112 = scmp.eq.s32.totalorder %s22, 1
      %p113 = por %p111, %p112
      %p115 = scmp.ne.s32.totalorder %s98, %s114
      %p116 = scmp.eq.s32.totalorder %s22, 0
      %p117 = por %p115, %p116
      %p118 = scmp.le.s32.totalorder 1, %s16
      %p119 = scmp.lt.s32.totalorder %s16, 3
      %p120 = pnand %p118, %p119
      %p121 = pneg %p120
      // Predicated region
      $region9: #{tpu_custom_call.1} parent=5 // pred_check
        _
      $region10: #{tpu_custom_call.1} parent=5 // pred_check_branch
        %123 = sbr.rel (%p120) target = $region12
      $region11: #{tpu_custom_call.1} parent=5 // pred_region
        %s124 = ssub.s32 %s16, 1
        // Predicated region
        $region13: #{tpu_custom_call.1} parent=11 // pred_check
          %p125 = pneg %p63
        $region14: #{tpu_custom_call.1} parent=11 // pred_check_branch
          %127 = sbr.rel (%p125) target = $region16
        $region15: #{tpu_custom_call.1} parent=11 // pred_region
          %129 = vsyncadd [#allocation6], 0
          %s130 = sshll.u32 %s1, 4
          %s131 = int_to_ptr.hbm [resolvable:$true] %s130
          %s132 = sshll.u32 [#allocation5], 4
          %s133 = int_to_ptr.vmem [resolvable:$true] %s132
          %138 = dma.hbm_to_vmem [thread:$0]  %s131, 2048, %s133, [#allocation6], 128, 128, 8
        $region16: #{tpu_custom_call.1} parent=11 // pred_fallthru
          _
        // Predicated region
        $region17: #{tpu_custom_call.1} parent=11 // pred_check
          %p139 = pneg %p84
        $region18: #{tpu_custom_call.1} parent=11 // pred_check_branch
          %141 = sbr.rel (%p139) target = $region20
        $region19: #{tpu_custom_call.1} parent=11 // pred_region
          %143 = vsyncadd [#allocation6], 0
          %s144 = sshll.u32 %s2, 4
          %s145 = int_to_ptr.hbm [resolvable:$true] %s144
          %s146 = sshll.u32 [#allocation7], 4
          %s147 = int_to_ptr.vmem [resolvable:$true] %s146
          %152 = dma.hbm_to_vmem [thread:$0]  %s145, 1024, %s147, [#allocation6], 64, 64, 4
        $region20: #{tpu_custom_call.1} parent=11 // pred_fallthru
          _
      $region12: #{tpu_custom_call.1} parent=5 // pred_fallthru
        _
      %p153 = scmp.lt.s32.totalorder %s16, 2
      // Predicated region
      $region21: #{tpu_custom_call.1} parent=5 // pred_check
        %p154 = pneg %p153
      $region22: #{tpu_custom_call.1} parent=5 // pred_check_branch
        %156 = sbr.rel (%p154) target = $region24
      $region23: #{tpu_custom_call.1} parent=5 // pred_region
        // Predicated region
        $region25: #{tpu_custom_call.1} parent=23 // pred_check
          %p157 = pneg %p36
        $region26: #{tpu_custom_call.1} parent=23 // pred_check_branch
          %159 = sbr.rel (%p157) target = $region28
        $region27: #{tpu_custom_call.1} parent=23 // pred_region
          %s160 = sand.u32 %s26, 1
          %s161 = scalar_lea.sflag [#allocation3], %s160
          %s162 = sand.u32 %s26, 1
          %s163 = smul.addr %s162, 40
          %s164 = scalar_lea.vmem [#allocation2], %s163
          %s165 = smul.u32 10, %s16
          %s166 = ssub.s32 18, %s165
          %p167 = scmp.lt.s32.totalorder %s166, 10
          %s168 = scalar_select %p167, %s166, 10
          %s169 = smul.u32 4, %s168
          %s170 = ssub.s32 40, %s169
          %s171 = sshll.u32 %s170, 4
          %172 = vsyncadd %s161, %s171
          %p173 = scmp.ne.s32.totalorder 0, %s169
          %s174 = smul.addr %s165, 4
          %s175 = scalar_lea.hbm %s0, %s174
          %s176 = smul.u32 4, %s168
          %s177 = sshll.u32 %s175, 4
          %s178 = int_to_ptr.hbm [resolvable:$true] %s177
          %s179 = sshll.u32 %s164, 4
          %s180 = int_to_ptr.vmem [resolvable:$true] %s179
          %s181 = sshll.u32 %s176, 4
          %185 = dma.hbm_to_vmem [thread:$0]  (%p173), %s178, %s181, %s180, %s161, 64, 64, 4
        $region28: #{tpu_custom_call.1} parent=23 // pred_fallthru
          _
      $region24: #{tpu_custom_call.1} parent=5 // pred_fallthru
        _
      %p186 = scmp.le.s32.totalorder 1, %s16
      %p187 = scmp.lt.s32.totalorder %s16, 3
      %p188 = pnand %p186, %p187
      %p189 = pneg %p188
      // Predicated region
      $region29: #{tpu_custom_call.1} parent=5 // pred_check
        _
      $region30: #{tpu_custom_call.1} parent=5 // pred_check_branch
        %191 = sbr.rel (%p188) target = $region32
      $region31: #{tpu_custom_call.1} parent=5 // pred_region
        %s192 = ssub.s32 %s16, 1
        %s193 = sand.u32 %s29, 1
        %s194 = scalar_lea.sflag [#allocation3], %s193
        %s195 = sand.u32 %s29, 1
        %s196 = smul.addr %s195, 40
        %s197 = scalar_lea.vmem [#allocation2], %s196
        // Predicated region
        $region33: #{tpu_custom_call.1} parent=31 // pred_check
          %p198 = pneg %p42
        $region34: #{tpu_custom_call.1} parent=31 // pred_check_branch
          %200 = sbr.rel (%p198) target = $region36
        $region35: #{tpu_custom_call.1} parent=31 // pred_region
          %202 = dma.done %s194, 640
        $region36: #{tpu_custom_call.1} parent=31 // pred_fallthru
          _
        // Predicated region
        $region37: #{tpu_custom_call.1} parent=31 // pred_check
          %p203 = pneg %p63
        $region38: #{tpu_custom_call.1} parent=31 // pred_check_branch
          %205 = sbr.rel (%p203) target = $region40
        $region39: #{tpu_custom_call.1} parent=31 // pred_region
          %207 = dma.done [#allocation6], 2048
        $region40: #{tpu_custom_call.1} parent=31 // pred_fallthru
          _
        // Predicated region
        $region41: #{tpu_custom_call.1} parent=31 // pred_check
          %p208 = pneg %p84
        $region42: #{tpu_custom_call.1} parent=31 // pred_check_branch
          %210 = sbr.rel (%p208) target = $region44
        $region43: #{tpu_custom_call.1} parent=31 // pred_region
          %212 = dma.done [#allocation6], 1024
        $region44: #{tpu_custom_call.1} parent=31 // pred_fallthru
          _
        %s213 = sand.u32 %s29, 1
        %s214 = scalar_lea.sflag [#allocation3], %s213
        %s215 = sand.u32 %s29, 1
        %s216 = smul.addr %s215, 40
        %s217 = scalar_lea.vmem [#allocation2], %s216
        %p218 = pneg %p42
        %p219 = pneg %p39
        %p220 = pneg %p63
        %p221 = pneg %p60
        %p222 = pneg %p84
        %p223 = pneg %p81
        %p224 = pneg %p110
        %p225 = pneg %p107
        %s226 = sand.u32 %s97, 1
        %s227 = scalar_lea.sflag [#allocation4], %s226
        %s228 = sand.u32 %s97, 1
        %s229 = smul.addr %s228, 40
        %s230 = scalar_lea.vmem [#allocation8], %s229
        %s231 = smul.u32 10, %s21
        %s232 = ssub.s32 18, %s231
        %p233 = scmp.lt.s32.totalorder %s232, 10
        %s234 = scalar_select %p233, %s232, 10
        %s235 = smul.u32 4, %s234
        %s236 = smul.u32 10, %s21
        %s237 = ssub.s32 18, %s236
        %p238 = scmp.lt.s32.totalorder %s237, 10
        %s239 = scalar_select %p238, %s237, 10
        %s240 = smul.u32 4, %s239
        %v241 = vld [vmem:[%s197] sm:$0xf]
        %v242 = vld [vmem:[%s197 + $0x4] sm:$0xf]
        %v243 = vld [vmem:[%s197 + $0x8] sm:$0xf]
        %v244 = vld [vmem:[%s197 + $0xc] sm:$0xf]
        %v245 = vld [vmem:[%s197 + $0x10] sm:$0xf]
        %v246 = vld [vmem:[%s197 + $0x14] sm:$0xf]
        %v247 = vld [vmem:[%s197 + $0x18] sm:$0xf]
        %v248 = vld [vmem:[%s197 + $0x1c] sm:$0xf]
        %v249 = vld [vmem:[%s197 + $0x20] sm:$0xf]
        %v250 = vld [vmem:[%s197 + $0x24] sm:$0xf]
        %v251 = vld [vmem:[#allocation5] sm:$0xff]
        %v252 = vld [vmem:[#allocation5 + $0x8] sm:$0xff]
        %v253 = vld [vmem:[#allocation5 + $0x10] sm:$0xff]
        %v254 = vld [vmem:[#allocation5 + $0x18] sm:$0xff]
        %v255 = vld [vmem:[#allocation5 + $0x20] sm:$0xff]
        %v256 = vld [vmem:[#allocation5 + $0x28] sm:$0xff]
        %v257 = vld [vmem:[#allocation5 + $0x30] sm:$0xff]
        %v258 = vld [vmem:[#allocation5 + $0x38] sm:$0xff]
        %v259 = vld [vmem:[#allocation5 + $0x40] sm:$0xff]
        %v260 = vld [vmem:[#allocation5 + $0x48] sm:$0xff]
        %v261 = vld [vmem:[#allocation5 + $0x50] sm:$0xff]
        %v262 = vld [vmem:[#allocation5 + $0x58] sm:$0xff]
        %v263 = vld [vmem:[#allocation5 + $0x60] sm:$0xff]
        %v264 = vld [vmem:[#allocation5 + $0x68] sm:$0xff]
        %v265 = vld [vmem:[#allocation5 + $0x70] sm:$0xff]
        %v266 = vld [vmem:[#allocation5 + $0x78] sm:$0xff]
        %v277 = vunpack.c.l.b16 %v241
        %v278 = vunpack.c.l.b16 %v242
        %v279 = vunpack.c.l.b16 %v243
        %v280 = vunpack.c.l.b16 %v244
        %v281 = vunpack.c.l.b16 %v245
        %v282 = vunpack.c.l.b16 %v246
        %v283 = vunpack.c.l.b16 %v247
        %v284 = vunpack.c.l.b16 %v248
        %v285 = vunpack.c.l.b16 %v249
        %v286 = vunpack.c.l.b16 %v250
        %v287 = vpack.c.b16 %v278, %v277
        %v288 = vpack.c.b16 %v280, %v279
        %v289 = vpack.c.b16 %v282, %v281
        %v290 = vpack.c.b16 %v284, %v283
        %v291 = vpack.c.b16 %v286, %v285
        %v313 = vunpack.c.l.b16 %v251
        %v314 = vunpack.c.h.b16 %v251
        %v315 = vunpack.c.l.b16 %v252
        %v316 = vunpack.c.h.b16 %v252
        %v317 = vunpack.c.l.b16 %v253
        %v318 = vunpack.c.h.b16 %v253
        %v319 = vunpack.c.l.b16 %v254
        %v320 = vunpack.c.h.b16 %v254
        %v321 = vunpack.c.l.b16 %v255
        %v322 = vunpack.c.h.b16 %v255
        %v323 = vunpack.c.l.b16 %v256
        %v324 = vunpack.c.h.b16 %v256
        %v325 = vunpack.c.l.b16 %v257
        %v326 = vunpack.c.h.b16 %v257
        %v327 = vunpack.c.l.b16 %v258
        %v328 = vunpack.c.h.b16 %v258
        %v329 = vunpack.c.l.b16 %v259
        %v330 = vunpack.c.h.b16 %v259
        %v331 = vunpack.c.l.b16 %v260
        %v332 = vunpack.c.h.b16 %v260
        %v333 = vunpack.c.l.b16 %v261
        %v334 = vunpack.c.h.b16 %v261
        %v335 = vunpack.c.l.b16 %v262
        %v336 = vunpack.c.h.b16 %v262
        %v337 = vunpack.c.l.b16 %v263
        %v338 = vunpack.c.h.b16 %v263
        %v339 = vunpack.c.l.b16 %v264
        %v340 = vunpack.c.h.b16 %v264
        %v341 = vunpack.c.l.b16 %v265
        %v342 = vunpack.c.h.b16 %v265
        %v343 = vunpack.c.l.b16 %v266
        %v344 = vunpack.c.h.b16 %v266
        %v345 = vpack.c.b16 %v315, %v313
        %v346 = vpack.c.b16 %v316, %v314
        %v347 = vpack.c.b16 %v319, %v317
        %v348 = vpack.c.b16 %v320, %v318
        %v349 = vpack.c.b16 %v323, %v321
        %v350 = vpack.c.b16 %v324, %v322
        %v351 = vpack.c.b16 %v327, %v325
        %v352 = vpack.c.b16 %v328, %v326
        %v353 = vpack.c.b16 %v331, %v329
        %v354 = vpack.c.b16 %v332, %v330
        %v355 = vpack.c.b16 %v335, %v333
        %v356 = vpack.c.b16 %v336, %v334
        %v357 = vpack.c.b16 %v339, %v337
        %v358 = vpack.c.b16 %v340, %v338
        %v359 = vpack.c.b16 %v343, %v341
        %v360 = vpack.c.b16 %v344, %v342
        %377 = vmatpush.bf16.msra.mxu0 %v359
        %378 = vmatpush.bf16.msra.mxu0 %v357
        %379 = vmatpush.bf16.msra.mxu0 %v355
        %380 = vmatpush.bf16.msra.mxu0 %v353
        %381 = vmatpush.bf16.msra.mxu0 %v351
        %382 = vmatpush.bf16.msra.mxu0 %v349
        %383 = vmatpush.bf16.msra.mxu0 %v347
        %384 = vmatpush.bf16.msra.mxu0 %v345
        %385 = vmatmul.bf16.gmra.mxu0 %v287
        %v386 = vpop.f32.mrf.mxu0
        %v387 = vadd.f32 0.0, %v386
        %v388 = vpop.f32.mrf.mxu0
        %v389 = vadd.f32 0.0, %v388
        %390 = vmatmul.bf16.gmra.mxu0 %v288
        %v391 = vpop.f32.mrf.mxu0
        %v392 = vadd.f32 0.0, %v391
        %v393 = vpop.f32.mrf.mxu0
        %v394 = vadd.f32 0.0, %v393
        %395 = vmatmul.bf16.gmra.mxu0 %v289
        %v396 = vpop.f32.mrf.mxu0
        %v397 = vadd.f32 0.0, %v396
        %v398 = vpop.f32.mrf.mxu0
        %v399 = vadd.f32 0.0, %v398
        %400 = vmatmul.bf16.gmra.mxu0 %v290
        %v401 = vpop.f32.mrf.mxu0
        %v402 = vadd.f32 0.0, %v401
        %v403 = vpop.f32.mrf.mxu0
        %v404 = vadd.f32 0.0, %v403
        %405 = vmatmul.bf16.gmra.mxu0 %v291
        %v406 = vpop.f32.mrf.mxu0
        %v407 = vadd.f32 0.0, %v406
        %v408 = vpop.f32.mrf.mxu0
        %v409 = vadd.f32 0.0, %v408
        %410 = vdwg.mxu0
        %411 = vmatpush.bf16.msra.mxu0 %v360
        %412 = vmatpush.bf16.msra.mxu0 %v358
        %413 = vmatpush.bf16.msra.mxu0 %v356
        %414 = vmatpush.bf16.msra.mxu0 %v354
        %415 = vmatpush.bf16.msra.mxu0 %v352
        %416 = vmatpush.bf16.msra.mxu0 %v350
        %417 = vmatpush.bf16.msra.mxu0 %v348
        %418 = vmatpush.bf16.msra.mxu0 %v346
        %419 = vmatmul.bf16.gmra.mxu0 %v287
        %v420 = vpop.f32.mrf.mxu0
        %v421 = vadd.f32 0.0, %v420
        %v422 = vpop.f32.mrf.mxu0
        %v423 = vadd.f32 0.0, %v422
        %424 = vmatmul.bf16.gmra.mxu0 %v288
        %v425 = vpop.f32.mrf.mxu0
        %v426 = vadd.f32 0.0, %v425
        %v427 = vpop.f32.mrf.mxu0
        %v428 = vadd.f32 0.0, %v427
        %429 = vmatmul.bf16.gmra.mxu0 %v289
        %v430 = vpop.f32.mrf.mxu0
        %v431 = vadd.f32 0.0, %v430
        %v432 = vpop.f32.mrf.mxu0
        %v433 = vadd.f32 0.0, %v432
        %434 = vmatmul.bf16.gmra.mxu0 %v290
        %v435 = vpop.f32.mrf.mxu0
        %v436 = vadd.f32 0.0, %v435
        %v437 = vpop.f32.mrf.mxu0
        %v438 = vadd.f32 0.0, %v437
        %439 = vmatmul.bf16.gmra.mxu0 %v291
        %v440 = vpop.f32.mrf.mxu0
        %v441 = vadd.f32 0.0, %v440
        %v442 = vpop.f32.mrf.mxu0
        %v443 = vadd.f32 0.0, %v442
        %444 = vdwg.mxu0
        %v445 = vmax.f32 %v387, 0.0
        %v446 = vmax.f32 %v389, 0.0
        %v447 = vmax.f32 %v392, 0.0
        %v448 = vmax.f32 %v394, 0.0
        %v449 = vmax.f32 %v397, 0.0
        %v450 = vmax.f32 %v399, 0.0
        %v451 = vmax.f32 %v402, 0.0
        %v452 = vmax.f32 %v404, 0.0
        %v453 = vmax.f32 %v407, 0.0
        %v454 = vmax.f32 %v409, 0.0
        %v455 = vmul.f32 %v445, %v445
        %v456 = vmul.f32 %v446, %v446
        %v457 = vmul.f32 %v447, %v447
        %v458 = vmul.f32 %v448, %v448
        %v459 = vmul.f32 %v449, %v449
        %v460 = vmul.f32 %v450, %v450
        %v461 = vmul.f32 %v451, %v451
        %v462 = vmul.f32 %v452, %v452
        %v463 = vmul.f32 %v453, %v453
        %v464 = vmul.f32 %v454, %v454
        %v465 = vpack.c.bf16 %v456, %v455
        %v466 = vpack.c.bf16 %v458, %v457
        %v467 = vpack.c.bf16 %v460, %v459
        %v468 = vpack.c.bf16 %v462, %v461
        %v469 = vpack.c.bf16 %v464, %v463
        %v470 = vld [vmem:[#allocation7] sm:$0xf]
        %v471 = vld [vmem:[#allocation7 + $0x4] sm:$0xf]
        %v472 = vld [vmem:[#allocation7 + $0x8] sm:$0xf]
        %v473 = vld [vmem:[#allocation7 + $0xc] sm:$0xf]
        %v474 = vld [vmem:[#allocation7 + $0x10] sm:$0xf]
        %v475 = vld [vmem:[#allocation7 + $0x14] sm:$0xf]
        %v476 = vld [vmem:[#allocation7 + $0x18] sm:$0xf]
        %v477 = vld [vmem:[#allocation7 + $0x1c] sm:$0xf]
        %v478 = vld [vmem:[#allocation7 + $0x20] sm:$0xf]
        %v479 = vld [vmem:[#allocation7 + $0x24] sm:$0xf]
        %v480 = vld [vmem:[#allocation7 + $0x28] sm:$0xf]
        %v481 = vld [vmem:[#allocation7 + $0x2c] sm:$0xf]
        %v482 = vld [vmem:[#allocation7 + $0x30] sm:$0xf]
        %v483 = vld [vmem:[#allocation7 + $0x34] sm:$0xf]
        %v484 = vld [vmem:[#allocation7 + $0x38] sm:$0xf]
        %v485 = vld [vmem:[#allocation7 + $0x3c] sm:$0xf]
        %v502 = vunpack.c.l.b16 %v470
        %v503 = vunpack.c.l.b16 %v471
        %v504 = vunpack.c.l.b16 %v472
        %v505 = vunpack.c.l.b16 %v473
        %v506 = vunpack.c.l.b16 %v474
        %v507 = vunpack.c.l.b16 %v475
        %v508 = vunpack.c.l.b16 %v476
        %v509 = vunpack.c.l.b16 %v477
        %v510 = vunpack.c.l.b16 %v478
        %v511 = vunpack.c.l.b16 %v479
        %v512 = vunpack.c.l.b16 %v480
        %v513 = vunpack.c.l.b16 %v481
        %v514 = vunpack.c.l.b16 %v482
        %v515 = vunpack.c.l.b16 %v483
        %v516 = vunpack.c.l.b16 %v484
        %v517 = vunpack.c.l.b16 %v485
        %v518 = vpack.c.b16 %v503, %v502
        %v519 = vpack.c.b16 %v505, %v504
        %v520 = vpack.c.b16 %v507, %v506
        %v521 = vpack.c.b16 %v509, %v508
        %v522 = vpack.c.b16 %v511, %v510
        %v523 = vpack.c.b16 %v513, %v512
        %v524 = vpack.c.b16 %v515, %v514
        %v525 = vpack.c.b16 %v517, %v516
        %534 = vmatpush.bf16.msra.mxu0 %v525
        %535 = vmatpush.bf16.msra.mxu0 %v524
        %536 = vmatpush.bf16.msra.mxu0 %v523
        %537 = vmatpush.bf16.msra.mxu0 %v522
        %538 = vmatpush.bf16.msra.mxu0 %v521
        %539 = vmatpush.bf16.msra.mxu0 %v520
        %540 = vmatpush.bf16.msra.mxu0 %v519
        %541 = vmatpush.bf16.msra.mxu0 %v518
        %542 = vmatmul.bf16.gmra.mxu0 %v465
        %v543 = vpop.f32.mrf.mxu0
        %v544 = vadd.f32 0.0, %v543
        %v545 = vpop.f32.mrf.mxu0
        %v546 = vadd.f32 0.0, %v545
        %547 = vmatmul.bf16.gmra.mxu0 %v466
        %v548 = vpop.f32.mrf.mxu0
        %v549 = vadd.f32 0.0, %v548
        %v550 = vpop.f32.mrf.mxu0
        %v551 = vadd.f32 0.0, %v550
        %552 = vmatmul.bf16.gmra.mxu0 %v467
        %v553 = vpop.f32.mrf.mxu0
        %v554 = vadd.f32 0.0, %v553
        %v555 = vpop.f32.mrf.mxu0
        %v556 = vadd.f32 0.0, %v555
        %557 = vmatmul.bf16.gmra.mxu0 %v468
        %v558 = vpop.f32.mrf.mxu0
        %v559 = vadd.f32 0.0, %v558
        %v560 = vpop.f32.mrf.mxu0
        %v561 = vadd.f32 0.0, %v560
        %562 = vmatmul.bf16.gmra.mxu0 %v469
        %v563 = vpop.f32.mrf.mxu0
        %v564 = vadd.f32 0.0, %v563
        %v565 = vpop.f32.mrf.mxu0
        %v566 = vadd.f32 0.0, %v565
        %567 = vdwg.mxu0
        %v568 = vxor.u32 %v421, 2147483648
        %v569 = vxor.u32 %v423, 2147483648
        %v570 = vxor.u32 %v426, 2147483648
        %v571 = vxor.u32 %v428, 2147483648
        %v572 = vxor.u32 %v431, 2147483648
        %v573 = vxor.u32 %v433, 2147483648
        %v574 = vxor.u32 %v436, 2147483648
        %v575 = vxor.u32 %v438, 2147483648
        %v576 = vxor.u32 %v441, 2147483648
        %v577 = vxor.u32 %v443, 2147483648
        %v578 = vmul.f32 %v568, 1.442695
        %v579 = vpow.pop %v578
        %v580 = vmul.f32 %v569, 1.442695
        %v581 = vpow.pop %v580
        %v582 = vmul.f32 %v570, 1.442695
        %v583 = vpow.pop %v582
        %v584 = vmul.f32 %v571, 1.442695
        %v585 = vpow.pop %v584
        %v586 = vmul.f32 %v572, 1.442695
        %v587 = vpow.pop %v586
        %v588 = vmul.f32 %v573, 1.442695
        %v589 = vpow.pop %v588
        %v590 = vmul.f32 %v574, 1.442695
        %v591 = vpow.pop %v590
        %v592 = vmul.f32 %v575, 1.442695
        %v593 = vpow.pop %v592
        %v594 = vmul.f32 %v576, 1.442695
        %v595 = vpow.pop %v594
        %v596 = vmul.f32 %v577, 1.442695
        %v597 = vpow.pop %v596
        %v598 = vadd.f32 %v579, 1.0
        %v599 = vadd.f32 %v581, 1.0
        %v600 = vadd.f32 %v583, 1.0
        %v601 = vadd.f32 %v585, 1.0
        %v602 = vadd.f32 %v587, 1.0
        %v603 = vadd.f32 %v589, 1.0
        %v604 = vadd.f32 %v591, 1.0
        %v605 = vadd.f32 %v593, 1.0
        %v606 = vadd.f32 %v595, 1.0
        %v607 = vadd.f32 %v597, 1.0
        %v608 = vrcp.pop %v598
        %v609 = vmul.f32 %v598, %v608
        %v610 = vsub.f32 1.0, %v609
        %v611 = vmul.f32 %v608, %v610
        %v612 = vadd.f32 %v608, %v611
        %vm613 = vweird.f32 %v598
        %vm614 = vweird.f32 %v608
        %vm615 = vmor %vm613, %vm614
        %v616 = vsel %vm615, %v608, %v612
        %v617 = vand.u32 2147483647, %v598
        %vm618 = vcmp.eq.f32.partialorder %v617, 8.507059e+37
        %v619 = vand.u32 %v598, 2147483648
        %v620 = vor.u32 1.1754944e-38, %v619
        %v621 = vsel %vm618, %v620, %v616
        %v622 = vmul.f32 1.0, %v621
        %v623 = vrcp.pop %v599
        %v624 = vmul.f32 %v599, %v623
        %v625 = vsub.f32 1.0, %v624
        %v626 = vmul.f32 %v623, %v625
        %v627 = vadd.f32 %v623, %v626
        %vm628 = vweird.f32 %v599
        %vm629 = vweird.f32 %v623
        %vm630 = vmor %vm628, %vm629
        %v631 = vsel %vm630, %v623, %v627
        %v632 = vand.u32 2147483647, %v599
        %vm633 = vcmp.eq.f32.partialorder %v632, 8.507059e+37
        %v634 = vand.u32 %v599, 2147483648
        %v635 = vor.u32 1.1754944e-38, %v634
        %v636 = vsel %vm633, %v635, %v631
        %v637 = vmul.f32 1.0, %v636
        %v638 = vrcp.pop %v600
        %v639 = vmul.f32 %v600, %v638
        %v640 = vsub.f32 1.0, %v639
        %v641 = vmul.f32 %v638, %v640
        %v642 = vadd.f32 %v638, %v641
        %vm643 = vweird.f32 %v600
        %vm644 = vweird.f32 %v638
        %vm645 = vmor %vm643, %vm644
        %v646 = vsel %vm645, %v638, %v642
        %v647 = vand.u32 2147483647, %v600
        %vm648 = vcmp.eq.f32.partialorder %v647, 8.507059e+37
        %v649 = vand.u32 %v600, 2147483648
        %v650 = vor.u32 1.1754944e-38, %v649
        %v651 = vsel %vm648, %v650, %v646
        %v652 = vmul.f32 1.0, %v651
        %v653 = vrcp.pop %v601
        %v654 = vmul.f32 %v601, %v653
        %v655 = vsub.f32 1.0, %v654
        %v656 = vmul.f32 %v653, %v655
        %v657 = vadd.f32 %v653, %v656
        %vm658 = vweird.f32 %v601
        %vm659 = vweird.f32 %v653
        %vm660 = vmor %vm658, %vm659
        %v661 = vsel %vm660, %v653, %v657
        %v662 = vand.u32 2147483647, %v601
        %vm663 = vcmp.eq.f32.partialorder %v662, 8.507059e+37
        %v664 = vand.u32 %v601, 2147483648
        %v665 = vor.u32 1.1754944e-38, %v664
        %v666 = vsel %vm663, %v665, %v661
        %v667 = vmul.f32 1.0, %v666
        %v668 = vrcp.pop %v602
        %v669 = vmul.f32 %v602, %v668
        %v670 = vsub.f32 1.0, %v669
        %v671 = vmul.f32 %v668, %v670
        %v672 = vadd.f32 %v668, %v671
        %vm673 = vweird.f32 %v602
        %vm674 = vweird.f32 %v668
        %vm675 = vmor %vm673, %vm674
        %v676 = vsel %vm675, %v668, %v672
        %v677 = vand.u32 2147483647, %v602
        %vm678 = vcmp.eq.f32.partialorder %v677, 8.507059e+37
        %v679 = vand.u32 %v602, 2147483648
        %v680 = vor.u32 1.1754944e-38, %v679
        %v681 = vsel %vm678, %v680, %v676
        %v682 = vmul.f32 1.0, %v681
        %v683 = vrcp.pop %v603
        %v684 = vmul.f32 %v603, %v683
        %v685 = vsub.f32 1.0, %v684
        %v686 = vmul.f32 %v683, %v685
        %v687 = vadd.f32 %v683, %v686
        %vm688 = vweird.f32 %v603
        %vm689 = vweird.f32 %v683
        %vm690 = vmor %vm688, %vm689
        %v691 = vsel %vm690, %v683, %v687
        %v692 = vand.u32 2147483647, %v603
        %vm693 = vcmp.eq.f32.partialorder %v692, 8.507059e+37
        %v694 = vand.u32 %v603, 2147483648
        %v695 = vor.u32 1.1754944e-38, %v694
        %v696 = vsel %vm693, %v695, %v691
        %v697 = vmul.f32 1.0, %v696
        %v698 = vrcp.pop %v604
        %v699 = vmul.f32 %v604, %v698
        %v700 = vsub.f32 1.0, %v699
        %v701 = vmul.f32 %v698, %v700
        %v702 = vadd.f32 %v698, %v701
        %vm703 = vweird.f32 %v604
        %vm704 = vweird.f32 %v698
        %vm705 = vmor %vm703, %vm704
        %v706 = vsel %vm705, %v698, %v702
        %v707 = vand.u32 2147483647, %v604
        %vm708 = vcmp.eq.f32.partialorder %v707, 8.507059e+37
        %v709 = vand.u32 %v604, 2147483648
        %v710 = vor.u32 1.1754944e-38, %v709
        %v711 = vsel %vm708, %v710, %v706
        %v712 = vmul.f32 1.0, %v711
        %v713 = vrcp.pop %v605
        %v714 = vmul.f32 %v605, %v713
        %v715 = vsub.f32 1.0, %v714
        %v716 = vmul.f32 %v713, %v715
        %v717 = vadd.f32 %v713, %v716
        %vm718 = vweird.f32 %v605
        %vm719 = vweird.f32 %v713
        %vm720 = vmor %vm718, %vm719
        %v721 = vsel %vm720, %v713, %v717
        %v722 = vand.u32 2147483647, %v605
        %vm723 = vcmp.eq.f32.partialorder %v722, 8.507059e+37
        %v724 = vand.u32 %v605, 2147483648
        %v725 = vor.u32 1.1754944e-38, %v724
        %v726 = vsel %vm723, %v725, %v721
        %v727 = vmul.f32 1.0, %v726
        %v728 = vrcp.pop %v606
        %v729 = vmul.f32 %v606, %v728
        %v730 = vsub.f32 1.0, %v729
        %v731 = vmul.f32 %v728, %v730
        %v732 = vadd.f32 %v728, %v731
        %vm733 = vweird.f32 %v606
        %vm734 = vweird.f32 %v728
        %vm735 = vmor %vm733, %vm734
        %v736 = vsel %vm735, %v728, %v732
        %v737 = vand.u32 2147483647, %v606
        %vm738 = vcmp.eq.f32.partialorder %v737, 8.507059e+37
        %v739 = vand.u32 %v606, 2147483648
        %v740 = vor.u32 1.1754944e-38, %v739
        %v741 = vsel %vm738, %v740, %v736
        %v742 = vmul.f32 1.0, %v741
        %v743 = vrcp.pop %v607
        %v744 = vmul.f32 %v607, %v743
        %v745 = vsub.f32 1.0, %v744
        %v746 = vmul.f32 %v743, %v745
        %v747 = vadd.f32 %v743, %v746
        %vm748 = vweird.f32 %v607
        %vm749 = vweird.f32 %v743
        %vm750 = vmor %vm748, %vm749
        %v751 = vsel %vm750, %v743, %v747
        %v752 = vand.u32 2147483647, %v607
        %vm753 = vcmp.eq.f32.partialorder %v752, 8.507059e+37
        %v754 = vand.u32 %v607, 2147483648
        %v755 = vor.u32 1.1754944e-38, %v754
        %v756 = vsel %vm753, %v755, %v751
        %v757 = vmul.f32 1.0, %v756
        %v758 = vmul.f32 %v622, %v544
        %v759 = vmul.f32 %v637, %v546
        %v760 = vmul.f32 %v652, %v549
        %v761 = vmul.f32 %v667, %v551
        %v762 = vmul.f32 %v682, %v554
        %v763 = vmul.f32 %v697, %v556
        %v764 = vmul.f32 %v712, %v559
        %v765 = vmul.f32 %v727, %v561
        %v766 = vmul.f32 %v742, %v564
        %v767 = vmul.f32 %v757, %v566
        %v768 = vpack.c.bf16 %v758, %v758
        %v769 = vpack.c.bf16 %v759, %v759
        %v770 = vpack.c.bf16 %v760, %v760
        %v771 = vpack.c.bf16 %v761, %v761
        %v772 = vpack.c.bf16 %v762, %v762
        %v773 = vpack.c.bf16 %v763, %v763
        %v774 = vpack.c.bf16 %v764, %v764
        %v775 = vpack.c.bf16 %v765, %v765
        %v776 = vpack.c.bf16 %v766, %v766
        %v777 = vpack.c.bf16 %v767, %v767
        %778 = vst [vmem:[%s230] sm:$0xf] %v768
        %779 = vst [vmem:[%s230 + $0x4] sm:$0xf] %v769
        %780 = vst [vmem:[%s230 + $0x8] sm:$0xf] %v770
        %781 = vst [vmem:[%s230 + $0xc] sm:$0xf] %v771
        %782 = vst [vmem:[%s230 + $0x10] sm:$0xf] %v772
        %783 = vst [vmem:[%s230 + $0x14] sm:$0xf] %v773
        %784 = vst [vmem:[%s230 + $0x18] sm:$0xf] %v774
        %785 = vst [vmem:[%s230 + $0x1c] sm:$0xf] %v775
        %786 = vst [vmem:[%s230 + $0x20] sm:$0xf] %v776
        %787 = vst [vmem:[%s230 + $0x24] sm:$0xf] %v777
        %s788 = sand.u32 %s97, 1
        %s789 = scalar_lea.sflag [#allocation4], %s788
        %s790 = sand.u32 %s97, 1
        %s791 = smul.addr %s790, 40
        %s792 = scalar_lea.vmem [#allocation8], %s791
        // Predicated region
        $region45: #{tpu_custom_call.1} parent=31 // pred_check
          %p793 = pneg %p107
        $region46: #{tpu_custom_call.1} parent=31 // pred_check_branch
          %795 = sbr.rel (%p793) target = $region48
        $region47: #{tpu_custom_call.1} parent=31 // pred_region
          %s796 = smul.u32 10, %s21
          %s797 = ssub.s32 18, %s796
          %p798 = scmp.lt.s32.totalorder %s797, 10
          %s799 = scalar_select %p798, %s797, 10
          %s800 = smul.u32 4, %s799
          %s801 = ssub.s32 40, %s800
          %s802 = sshll.u32 %s801, 4
          %803 = vsyncadd %s789, %s802
          %p804 = scmp.ne.s32.totalorder 0, %s800
          %s805 = smul.addr %s796, 4
          %s806 = scalar_lea.hbm %s3, %s805
          %s807 = smul.u32 4, %s799
          %s808 = sshll.u32 %s792, 4
          %s809 = int_to_ptr.vmem [resolvable:$true] %s808
          %s810 = sshll.u32 %s806, 4
          %s811 = int_to_ptr.hbm [resolvable:$true] %s810
          %s812 = sshll.u32 %s807, 4
          %816 = dma.vmem_to_hbm [thread:$0]  (%p804), %s809, %s812, %s811, %s789, 64, 64, 4
        $region48: #{tpu_custom_call.1} parent=31 // pred_fallthru
          _
      $region32: #{tpu_custom_call.1} parent=5 // pred_fallthru
        _
      %p817 = scmp.le.s32.totalorder 2, %s16
      // Predicated region
      $region49: #{tpu_custom_call.1} parent=5 // pred_check
        %p818 = pneg %p817
      $region50: #{tpu_custom_call.1} parent=5 // pred_check_branch
        %820 = sbr.rel (%p818) target = $region52
      $region51: #{tpu_custom_call.1} parent=5 // pred_region
        %s821 = ssub.s32 %s16, 2
        // Predicated region
        $region53: #{tpu_custom_call.1} parent=51 // pred_check
          %p822 = pneg %p113
        $region54: #{tpu_custom_call.1} parent=51 // pred_check_branch
          %824 = sbr.rel (%p822) target = $region56
        $region55: #{tpu_custom_call.1} parent=51 // pred_region
          %s825 = sand.u32 %s98, 1
          %s826 = scalar_lea.sflag [#allocation4], %s825
          %s827 = sand.u32 %s98, 1
          %s828 = smul.addr %s827, 40
          %s829 = scalar_lea.vmem [#allocation8], %s828
          %831 = dma.done %s826, 640
        $region56: #{tpu_custom_call.1} parent=51 // pred_fallthru
          _
      $region52: #{tpu_custom_call.1} parent=5 // pred_fallthru
        _
    $region6: #{tpu_custom_call.1} parent=1 // loop_footer
      %s20 = sadd.s32 1, %s16
    $region7: #{tpu_custom_call.1} parent=1 // loop_footer_branch
      %15 = sbr.rel target = $region3
    $region8: #{tpu_custom_call.1} parent=1 // loop_exit
      _
    %832 = vsyncpa [#allocation3], 1
    %s833 = scalar_lea.sflag [#allocation3], 1
    %834 = vsyncpa %s833, 1
    %835 = vsyncpa [#allocation6], 1
    %836 = vsyncpa [#allocation4], 1
    %s837 = scalar_lea.sflag [#allocation4], 1
    %838 = vsyncpa %s837, 1

</llo_original>
